<compile_context>
chip_gen: v5e
topology: v5e:2x2
jax: 0.10.0
libtpu: 0.0.40
codegen_flags: <defaults>
</compile_context>

<pallas_src>
import functools

import jax
import jax.numpy as jnp
from jax.experimental import pallas as pl
from jax.experimental.pallas import tpu as pltpu

BN_EPS = 1e-5
LANE = 128


def _round_up(v, m):
    return (v + m - 1) // m * m


# ---------------- fused, row-tiled Pallas kernel ----------------

def build_fused_gnn_kernel(layer_dims, num_classes, row_tile, num_layers):
    """layer_dims: tuple of (fin_pad, fout_pad) per layer (lane-padded widths)."""

    def kernel(*refs):
        adj_ref, x_ref = refs[0], refs[1]
        w_refs = refs[2:2 + num_layers]
        b_refs = refs[2 + num_layers:2 + 2 * num_layers]
        out_ref = refs[2 + 2 * num_layers]
        h_refs = refs[2 + 2 * num_layers + 1:]          # 2 ping-pong scratch bufs

        layer = pl.program_id(0)
        tile = pl.program_id(1)
        row0 = pl.multiple_of(tile * row_tile, row_tile)

        adj = adj_ref[...]          # (row_tile, n_pad) bf16, streamed per step

        def layer_body(l):
            def body():
                # h_prev source: padded x for layer 0, else previous ping-pong buf.
                if l == 0:
                    h_prev = x_ref[...]                    # (n_pad, fin_pad) bf16
                else:
                    h_prev = h_refs[(l - 1) % 2][...]      # (n_pad, hid_pad) bf16
                w = w_refs[l][...]                         # (fin_pad, fout_pad) bf16
                b = b_refs[l][...]                         # (1, fout_pad) f32

                # Â_tile @ h first (avoids recomputing h @ W per row tile), then @ W.
                z = jnp.dot(adj, h_prev, preferred_element_type=jnp.float32)
                z = jnp.dot(z.astype(jnp.bfloat16), w,
                            preferred_element_type=jnp.float32)
                z = z + b                                  # (row_tile, fout_pad) f32

                if l < num_layers - 1:
                    # BN already folded into w/b; dropout = identity (eval mode).
                    z = jnp.maximum(z, 0.0)
                    h_refs[l % 2][pl.ds(row0, row_tile), :] = z.astype(jnp.bfloat16)
                else:
                    # log_softmax over the real class columns; padded lanes masked.
                    col = jax.lax.broadcasted_iota(jnp.int32, z.shape, 1)
                    valid = col < num_classes
                    zm = jnp.where(valid, z, jnp.float32(-1e30))
                    m = jnp.max(zm, axis=1, keepdims=True)
                    s = zm - m
                    lse = jnp.log(jnp.sum(jnp.where(valid, jnp.exp(s), 0.0),
                                          axis=1, keepdims=True))
                    out_ref[...] = s - lse                 # lane-dense unmasked store
            return body

        for l in range(num_layers):
            pl.when(layer == l)(layer_body(l))

    return kernel


# ---------------- host-side helpers ----------------

def _fold_bn(w, b, gamma, beta, mean, var):
    """Fold eval-mode BatchNorm1d into the conv weight/bias (exact)."""
    scale = gamma * jax.lax.rsqrt(var + BN_EPS)            # (1, fout)
    return w * scale, (b - mean) * scale + beta


def gcn_normalize(adj):
    """Â = D^{-1/2} (A + I) D^{-1/2}; computed once and reused across forwards."""
    n = adj.shape[0]
    a_hat = adj + jnp.eye(n, dtype=adj.dtype)
    deg = jnp.sum(a_hat, axis=1)
    d_inv_sqrt = jnp.where(deg > 0, 1.0 / jnp.sqrt(deg), 0.0)
    return a_hat * d_inv_sqrt[:, None] * d_inv_sqrt[None, :]


@functools.partial(jax.jit, static_argnames=("num_layers", "row_tile"))
def gnn_forward(x, adj_norm, params, num_layers, row_tile=256):
    """Eval-mode forward: (L-1) x [GCNConv -> BN -> ReLU], then GCNConv ->
    log_softmax(dim=1).  One fused, row-tiled Pallas kernel."""
    n = adj_norm.shape[0]
    input_dim = x.shape[1]
    hidden_dim = params["conv_w"][0].shape[1] if num_layers > 1 else LANE
    num_classes = params["conv_w"][-1].shape[1]

    row_tile = min(row_tile, _round_up(n, 8))
    n_pad = _round_up(n, row_tile)
    n_tiles = n_pad // row_tile
    fin_pad = _round_up(input_dim, LANE)
    hid_pad = _round_up(hidden_dim, LANE)
    fout_pad = _round_up(num_classes, LANE)

    # Fold BN, pad feature axes to lane multiples, cast matmul operands to bf16.
    ws, bs, layer_dims = [], [], []
    for l in range(num_layers):
        w, b = params["conv_w"][l], params["conv_b"][l]
        if l < num_layers - 1:
            w, b = _fold_bn(w, b, params["bn_gamma"][l], params["bn_beta"][l],
                            params["bn_mean"][l], params["bn_var"][l])
        fi = fin_pad if l == 0 else hid_pad
        fo = fout_pad if l == num_layers - 1 else hid_pad
        w = jnp.pad(w, ((0, fi - w.shape[0]), (0, fo - w.shape[1])))
        b = jnp.pad(b, ((0, 0), (0, fo - b.shape[1])))
        ws.append(w.astype(jnp.bfloat16))
        bs.append(b.astype(jnp.float32))
        layer_dims.append((fi, fo))
    layer_dims = tuple(layer_dims)

    # Zero padding keeps the math exact: padded Â columns are zero (padded rows
    # never contaminate real rows), padded feature rows/cols of W are zero, and
    # padded class columns are masked out of the log_softmax.
    adj_p = jnp.pad(adj_norm, ((0, n_pad - n), (0, n_pad - n))).astype(jnp.bfloat16)
    x_p = jnp.pad(x, ((0, n_pad - n), (0, fin_pad - input_dim))).astype(jnp.bfloat16)

    kernel = build_fused_gnn_kernel(layer_dims, num_classes, row_tile, num_layers)

    in_specs = (
        [pl.BlockSpec((row_tile, n_pad), lambda l, i: (i, 0)),   # Â: streamed row tile
         pl.BlockSpec((n_pad, fin_pad), lambda l, i: (0, 0))]    # x: resident
        + [pl.BlockSpec((fi, fo), lambda l, i: (0, 0)) for fi, fo in layer_dims]
        + [pl.BlockSpec((1, fo), lambda l, i: (0, 0)) for _, fo in layer_dims]
    )
    out_spec = pl.BlockSpec((row_tile, fout_pad), lambda l, i: (i, 0))

    scratch = [pltpu.VMEM((n_pad, hid_pad), jnp.bfloat16),       # ping
               pltpu.VMEM((n_pad, hid_pad), jnp.bfloat16)]       # pong

    # Cost estimate (Â is streamed once per layer).
    flops = sum(2 * n_pad * n_pad * fi + 2 * n_pad * fi * fo for fi, fo in layer_dims)
    bytes_accessed = (2 * (num_layers * adj_p.size + x_p.size
                           + sum(w.size for w in ws))
                      + 4 * (sum(b.size for b in bs) + n_pad * fout_pad))

    # Explicit VMEM budget (double-buffered inputs/outputs + carried h scratch).
    vmem_est = (2 * row_tile * n_pad * 2 + 2 * n_pad * fin_pad * 2
                + 2 * sum(w.size for w in ws) * 2 + 2 * sum(b.size for b in bs) * 4
                + 2 * n_pad * hid_pad * 2 + 2 * row_tile * fout_pad * 4)
    vmem_limit = int(min(100 * 2 ** 20, max(32 * 2 ** 20, 2 * vmem_est)))

    out_padded = pl.pallas_call(
        kernel,
        grid=(num_layers, n_tiles),
        out_shape=jax.ShapeDtypeStruct((n_pad, fout_pad), jnp.float32),
        in_specs=in_specs,
        out_specs=out_spec,
        scratch_shapes=scratch,
        compiler_params=pltpu.CompilerParams(
            # layer axis must stay ordered (carried h); row axis kept "arbitrary"
            # because the carried scratch is per-core (see v7x TODO above).
            dimension_semantics=("arbitrary", "arbitrary"),
            vmem_limit_bytes=vmem_limit),
        cost_estimate=pl.CostEstimate(flops=flops,
                                      transcendentals=n_pad * fout_pad + n_pad,
                                      bytes_accessed=bytes_accessed),
    )(adj_p, x_p, *ws, *bs)
    return out_padded[:n, :num_classes]


# ---------------- reference & init ----------------

def reference_forward(x, adj_norm, params, num_layers):
    """Pure-JAX f32 reference (eval mode) for correctness checking."""
    h = x
    for l in range(num_layers):
        h = adj_norm @ h @ params["conv_w"][l] + params["conv_b"][l]
        if l < num_layers - 1:
            inv = jax.lax.rsqrt(params["bn_var"][l] + BN_EPS)
            h = ((h - params["bn_mean"][l]) * inv * params["bn_gamma"][l]
                 + params["bn_beta"][l])
            h = jnp.maximum(h, 0.0)
    return jax.nn.log_softmax(h, axis=1)


def init_gnn_params(key, input_dim, hidden_dim, output_dim, num_layers):
    """Deterministic parameter init matching the module's layer shapes."""
    params = {"conv_w": [], "conv_b": [], "bn_gamma": [], "bn_beta": [],
              "bn_mean": [], "bn_var": []}
    dims_in = [input_dim] + [hidden_dim] * (num_layers - 1)
    dims_out = [hidden_dim] * (num_layers - 1) + [output_dim]
    for l in range(num_layers):
        key, kw, kb = jax.random.split(key, 3)
        fan_in, fan_out = dims_in[l], dims_out[l]
        scale = jnp.sqrt(6.0 / (fan_in + fan_out))  # glorot-uniform-ish
        w = jax.random.uniform(kw, (fan_in, fan_out), jnp.float32, -scale, scale)
        b = jnp.zeros((1, fan_out), jnp.float32)
        params["conv_w"].append(w)
        params["conv_b"].append(b)
        if l < num_layers - 1:  # BN only on non-final layers
            key, kg, kbt, km, kv = jax.random.split(key, 5)
            params["bn_gamma"].append(
                1.0 + 0.1 * jax.random.normal(kg, (1, fan_out), jnp.float32))
            params["bn_beta"].append(
                0.1 * jax.random.normal(kbt, (1, fan_out), jnp.float32))
            params["bn_mean"].append(
                0.1 * jax.random.normal(km, (1, fan_out), jnp.float32))
            params["bn_var"].append(
                1.0 + 0.1 * jax.random.uniform(kv, (1, fan_out), jnp.float32))
    return params


if __name__ == "__main__":
    # Small deterministic problem: 32 nodes, 8 input feats, 32 hidden, 4 classes,
    # 3 GCN layers (model_type='gcn', num_heads=1, eval mode).  row_tile=16 gives
    # a (3 layers x 2 row tiles) grid, exercising the carried ping-pong scratch.
    N, INPUT_DIM, HIDDEN_DIM, OUTPUT_DIM, NUM_LAYERS = 32, 8, 32, 4, 3

    key = jax.random.PRNGKey(0)
    kx, kadj, kp = jax.random.split(key, 3)

    x = jax.random.normal(kx, (N, INPUT_DIM), jnp.float32)
    # symmetric 0/1 adjacency without self loops
    a = (jax.random.uniform(kadj, (N, N)) < 0.2).astype(jnp.float32)
    adj = jnp.clip(a + a.T, 0.0, 1.0) * (1.0 - jnp.eye(N, dtype=jnp.float32))

    params = init_gnn_params(kp, INPUT_DIM, HIDDEN_DIM, OUTPUT_DIM, NUM_LAYERS)

    # Â computed once (hoisted out of the forward) and reused.
    adj_norm = gcn_normalize(adj)

    out = gnn_forward(x, adj_norm, params, NUM_LAYERS, row_tile=16)
    out = jax.block_until_ready(out)

    ref = reference_forward(x, adj_norm, params, NUM_LAYERS)

    assert out.shape == (N, OUTPUT_DIM)
    assert bool(jnp.all(jnp.isfinite(out)))
    # log_softmax rows exponentiate-sum to ~1 (softmax itself is computed in f32)
    assert jnp.allclose(jnp.sum(jnp.exp(out), axis=1), 1.0, atol=1e-3)
    # bf16 operands / f32 accumulation vs f32 reference: loose tolerance check
    max_err = float(jnp.max(jnp.abs(out - ref)))
    assert max_err < 0.1, f"mismatch vs reference: {max_err}"

    # TODO(synk): Dropedge / dropout are training-only stochastic ops; the eval
    # forward implemented here treats them as identity, matching the module.
    print("KERNEL_OK")
</pallas_src>

<mosaic_0001>
module attributes {stable_mosaic.version = 11 : i64} {
  func.func @kernel(%arg0: i32, %arg1: i32, %arg2: memref<16x32xbf16, #tpu.memory_space<vmem>>, %arg3: memref<32x128xbf16, #tpu.memory_space<vmem>>, %arg4: memref<128x128xbf16, #tpu.memory_space<vmem>>, %arg5: memref<128x128xbf16, #tpu.memory_space<vmem>>, %arg6: memref<128x128xbf16, #tpu.memory_space<vmem>>, %arg7: memref<1x128xf32, #tpu.memory_space<vmem>>, %arg8: memref<1x128xf32, #tpu.memory_space<vmem>>, %arg9: memref<1x128xf32, #tpu.memory_space<vmem>>, %arg10: memref<16x128xf32, #tpu.memory_space<vmem>>, %arg11: memref<32x128xbf16, #tpu.memory_space<vmem>>, %arg12: memref<32x128xbf16, #tpu.memory_space<vmem>>) attributes {dimension_semantics = [#tpu.dimension_semantics<arbitrary>, #tpu.dimension_semantics<arbitrary>], iteration_bounds = array<i64: 3, 2>, scalar_prefetch = 0 : i64, scratch_operands = 2 : i64, tpu.core_type = #tpu.core_type<tc>, window_params = [{transform_indices = @transform_0, window_bounds = array<i64: 16, 32>}, {pipeline_mode = #tpu.pipeline_mode<synchronous>, transform_indices = @transform_1, window_bounds = array<i64: 32, 128>}, {pipeline_mode = #tpu.pipeline_mode<synchronous>, transform_indices = @transform_2, window_bounds = array<i64: 128, 128>}, {pipeline_mode = #tpu.pipeline_mode<synchronous>, transform_indices = @transform_3, window_bounds = array<i64: 128, 128>}, {pipeline_mode = #tpu.pipeline_mode<synchronous>, transform_indices = @transform_4, window_bounds = array<i64: 128, 128>}, {pipeline_mode = #tpu.pipeline_mode<synchronous>, transform_indices = @transform_5, window_bounds = array<i64: 1, 128>}, {pipeline_mode = #tpu.pipeline_mode<synchronous>, transform_indices = @transform_6, window_bounds = array<i64: 1, 128>}, {pipeline_mode = #tpu.pipeline_mode<synchronous>, transform_indices = @transform_7, window_bounds = array<i64: 1, 128>}, {transform_indices = @transform_8, window_bounds = array<i64: 16, 128>}]} {
    %c16_i32 = arith.constant 16 : i32
    %0 = arith.muli %arg1, %c16_i32 : i32
    %1 = tpu.assume_multiple %0, 16 : i32
    %c0 = arith.constant 0 : index
    %c0_0 = arith.constant 0 : index
    %2 = vector.load %arg2[%c0, %c0_0] : memref<16x32xbf16, #tpu.memory_space<vmem>>, vector<16x32xbf16>
    %c0_i32 = arith.constant 0 : i32
    %3 = arith.cmpi eq, %arg0, %c0_i32 : i32
    %4 = arith.extui %3 : i1 to i32
    %c0_i32_1 = arith.constant 0 : i32
    %5 = arith.cmpi ne, %4, %c0_i32_1 : i32
    scf.if %5 {
      %c0_4 = arith.constant 0 : index
      %c0_5 = arith.constant 0 : index
      %12 = vector.load %arg3[%c0_4, %c0_5] : memref<32x128xbf16, #tpu.memory_space<vmem>>, vector<32x128xbf16>
      %c0_6 = arith.constant 0 : index
      %c0_7 = arith.constant 0 : index
      %13 = vector.load %arg4[%c0_6, %c0_7] : memref<128x128xbf16, #tpu.memory_space<vmem>>, vector<128x128xbf16>
      %c0_8 = arith.constant 0 : index
      %c0_9 = arith.constant 0 : index
      %14 = vector.load %arg7[%c0_8, %c0_9] : memref<1x128xf32, #tpu.memory_space<vmem>>, vector<1x128xf32>
      %cst = arith.constant dense<0.000000e+00> : vector<16x128xf32>
      %15 = tpu.matmul %2, %12, %cst {dimension_numbers = #tpu.dot_dimension_numbers<[1], [0], [0], [1], [0, 0, 1, 1], [], []>} : vector<16x32xbf16>, vector<32x128xbf16>, vector<16x128xf32> -> vector<16x128xf32>
      %16 = arith.truncf %15 : vector<16x128xf32> to vector<16x128xbf16>
      %cst_10 = arith.constant dense<0.000000e+00> : vector<16x128xf32>
      %17 = tpu.matmul %16, %13, %cst_10 {dimension_numbers = #tpu.dot_dimension_numbers<[1], [0], [0], [1], [0, 0, 1, 1], [], []>} : vector<16x128xbf16>, vector<128x128xbf16>, vector<16x128xf32> -> vector<16x128xf32>
      %18 = vector.broadcast %14 : vector<1x128xf32> to vector<16x128xf32>
      %19 = arith.addf %17, %18 : vector<16x128xf32>
      %cst_11 = arith.constant 0.000000e+00 : f32
      %20 = vector.broadcast %cst_11 : f32 to vector<16x128xf32>
      %21 = arith.maximumf %19, %20 : vector<16x128xf32>
      %22 = arith.truncf %21 : vector<16x128xf32> to vector<16x128xbf16>
      %23 = arith.index_cast %1 : i32 to index
      %c0_12 = arith.constant 0 : index
      %24 = vector.load %arg11[%23, %c0_12] : memref<32x128xbf16, #tpu.memory_space<vmem>>, vector<16x128xbf16>
      tpu.vector_store %arg11[%23, %c0_12], %22 {strides = array<i32>} : memref<32x128xbf16, #tpu.memory_space<vmem>>, vector<16x128xbf16>,
    } else {
    }
    %c1_i32 = arith.constant 1 : i32
    %6 = arith.cmpi eq, %arg0, %c1_i32 : i32
    %7 = arith.extui %6 : i1 to i32
    %c0_i32_2 = arith.constant 0 : i32
    %8 = arith.cmpi ne, %7, %c0_i32_2 : i32
    scf.if %8 {
      %c0_4 = arith.constant 0 : index
      %c0_5 = arith.constant 0 : index
      %12 = vector.load %arg11[%c0_4, %c0_5] : memref<32x128xbf16, #tpu.memory_space<vmem>>, vector<32x128xbf16>
      %c0_6 = arith.constant 0 : index
      %c0_7 = arith.constant 0 : index
      %13 = vector.load %arg5[%c0_6, %c0_7] : memref<128x128xbf16, #tpu.memory_space<vmem>>, vector<128x128xbf16>
      %c0_8 = arith.constant 0 : index
      %c0_9 = arith.constant 0 : index
      %14 = vector.load %arg8[%c0_8, %c0_9] : memref<1x128xf32, #tpu.memory_space<vmem>>, vector<1x128xf32>
      %cst = arith.constant dense<0.000000e+00> : vector<16x128xf32>
      %15 = tpu.matmul %2, %12, %cst {dimension_numbers = #tpu.dot_dimension_numbers<[1], [0], [0], [1], [0, 0, 1, 1], [], []>} : vector<16x32xbf16>, vector<32x128xbf16>, vector<16x128xf32> -> vector<16x128xf32>
      %16 = arith.truncf %15 : vector<16x128xf32> to vector<16x128xbf16>
      %cst_10 = arith.constant dense<0.000000e+00> : vector<16x128xf32>
      %17 = tpu.matmul %16, %13, %cst_10 {dimension_numbers = #tpu.dot_dimension_numbers<[1], [0], [0], [1], [0, 0, 1, 1], [], []>} : vector<16x128xbf16>, vector<128x128xbf16>, vector<16x128xf32> -> vector<16x128xf32>
      %18 = vector.broadcast %14 : vector<1x128xf32> to vector<16x128xf32>
      %19 = arith.addf %17, %18 : vector<16x128xf32>
      %cst_11 = arith.constant 0.000000e+00 : f32
      %20 = vector.broadcast %cst_11 : f32 to vector<16x128xf32>
      %21 = arith.maximumf %19, %20 : vector<16x128xf32>
      %22 = arith.truncf %21 : vector<16x128xf32> to vector<16x128xbf16>
      %23 = arith.index_cast %1 : i32 to index
      %c0_12 = arith.constant 0 : index
      %24 = vector.load %arg12[%23, %c0_12] : memref<32x128xbf16, #tpu.memory_space<vmem>>, vector<16x128xbf16>
      tpu.vector_store %arg12[%23, %c0_12], %22 {strides = array<i32>} : memref<32x128xbf16, #tpu.memory_space<vmem>>, vector<16x128xbf16>,
    } else {
    }
    %c2_i32 = arith.constant 2 : i32
    %9 = arith.cmpi eq, %arg0, %c2_i32 : i32
    %10 = arith.extui %9 : i1 to i32
    %c0_i32_3 = arith.constant 0 : i32
    %11 = arith.cmpi ne, %10, %c0_i32_3 : i32
    scf.if %11 {
      %c0_4 = arith.constant 0 : index
      %c0_5 = arith.constant 0 : index
      %12 = vector.load %arg12[%c0_4, %c0_5] : memref<32x128xbf16, #tpu.memory_space<vmem>>, vector<32x128xbf16>
      %c0_6 = arith.constant 0 : index
      %c0_7 = arith.constant 0 : index
      %13 = vector.load %arg6[%c0_6, %c0_7] : memref<128x128xbf16, #tpu.memory_space<vmem>>, vector<128x128xbf16>
      %c0_8 = arith.constant 0 : index
      %c0_9 = arith.constant 0 : index
      %14 = vector.load %arg9[%c0_8, %c0_9] : memref<1x128xf32, #tpu.memory_space<vmem>>, vector<1x128xf32>
      %cst = arith.constant dense<0.000000e+00> : vector<16x128xf32>
      %15 = tpu.matmul %2, %12, %cst {dimension_numbers = #tpu.dot_dimension_numbers<[1], [0], [0], [1], [0, 0, 1, 1], [], []>} : vector<16x32xbf16>, vector<32x128xbf16>, vector<16x128xf32> -> vector<16x128xf32>
      %16 = arith.truncf %15 : vector<16x128xf32> to vector<16x128xbf16>
      %cst_10 = arith.constant dense<0.000000e+00> : vector<16x128xf32>
      %17 = tpu.matmul %16, %13, %cst_10 {dimension_numbers = #tpu.dot_dimension_numbers<[1], [0], [0], [1], [0, 0, 1, 1], [], []>} : vector<16x128xbf16>, vector<128x128xbf16>, vector<16x128xf32> -> vector<16x128xf32>
      %18 = vector.broadcast %14 : vector<1x128xf32> to vector<16x128xf32>
      %19 = arith.addf %17, %18 : vector<16x128xf32>
      %20 = tpu.iota {dimensions = array<i32: 1>} : vector<16x128xi32>
      %c4_i32 = arith.constant 4 : i32
      %21 = vector.broadcast %c4_i32 : i32 to vector<16x128xi32>
      %22 = arith.cmpi slt, %20, %21 : vector<16x128xi32>
      %cst_11 = arith.constant -1.000000e+30 : f32
      %23 = vector.broadcast %cst_11 : f32 to vector<16x128xf32>
      %24 = arith.select %22, %19, %23 : vector<16x128xi1>, vector<16x128xf32>
      %cst_12 = arith.constant dense<0xFF800000> : vector<16xf32>
      %25 = vector.multi_reduction <maximumf>, %24, %cst_12 [1] : vector<16x128xf32> to vector<16xf32>
      %26 = vector.shape_cast %25 : vector<16xf32> to vector<16x1xf32>
      %27 = vector.broadcast %26 : vector<16x1xf32> to vector<16x128xf32>
      %28 = arith.subf %24, %27 : vector<16x128xf32>
      %29 = math.exp %28 : vector<16x128xf32>
      %cst_13 = arith.constant 0.000000e+00 : f32
      %30 = vector.broadcast %cst_13 : f32 to vector<16x128xf32>
      %31 = arith.select %22, %29, %30 : vector<16x128xi1>, vector<16x128xf32>
      %cst_14 = arith.constant dense<0.000000e+00> : vector<16xf32>
      %32 = vector.multi_reduction <add>, %31, %cst_14 [1] : vector<16x128xf32> to vector<16xf32>
      %33 = vector.shape_cast %32 : vector<16xf32> to vector<16x1xf32>
      %34 = math.log %33 : vector<16x1xf32>
      %35 = vector.broadcast %34 : vector<16x1xf32> to vector<16x128xf32>
      %36 = arith.subf %28, %35 : vector<16x128xf32>
      %c0_15 = arith.constant 0 : index
      %c0_16 = arith.constant 0 : index
      %37 = vector.load %arg10[%c0_15, %c0_16] : memref<16x128xf32, #tpu.memory_space<vmem>>, vector<16x128xf32>
      tpu.vector_store %arg10[%c0_15, %c0_16], %36 {strides = array<i32>} : memref<16x128xf32, #tpu.memory_space<vmem>>, vector<16x128xf32>,
    } else {
    }
    return
  }
  func.func @transform_0(%arg0: i32, %arg1: i32) -> (i32, i32) {
    %c0_i32 = arith.constant 0 : i32
    %c0_i32_0 = arith.constant 0 : i32
    return %arg1, %c0_i32 : i32, i32
  }
  func.func @transform_1(%arg0: i32, %arg1: i32) -> (i32, i32) {
    %c0_i32 = arith.constant 0 : i32
    %c0_i32_0 = arith.constant 0 : i32
    %c0_i32_1 = arith.constant 0 : i32
    return %c0_i32, %c0_i32_0 : i32, i32
  }
  func.func @transform_2(%arg0: i32, %arg1: i32) -> (i32, i32) {
    %c0_i32 = arith.constant 0 : i32
    %c0_i32_0 = arith.constant 0 : i32
    %c0_i32_1 = arith.constant 0 : i32
    return %c0_i32, %c0_i32_0 : i32, i32
  }
  func.func @transform_3(%arg0: i32, %arg1: i32) -> (i32, i32) {
    %c0_i32 = arith.constant 0 : i32
    %c0_i32_0 = arith.constant 0 : i32
    %c0_i32_1 = arith.constant 0 : i32
    return %c0_i32, %c0_i32_0 : i32, i32
  }
  func.func @transform_4(%arg0: i32, %arg1: i32) -> (i32, i32) {
    %c0_i32 = arith.constant 0 : i32
    %c0_i32_0 = arith.constant 0 : i32
    %c0_i32_1 = arith.constant 0 : i32
    return %c0_i32, %c0_i32_0 : i32, i32
  }
  func.func @transform_5(%arg0: i32, %arg1: i32) -> (i32, i32) {
    %c0_i32 = arith.constant 0 : i32
    %c0_i32_0 = arith.constant 0 : i32
    %c0_i32_1 = arith.constant 0 : i32
    return %c0_i32, %c0_i32_0 : i32, i32
  }
  func.func @transform_6(%arg0: i32, %arg1: i32) -> (i32, i32) {
    %c0_i32 = arith.constant 0 : i32
    %c0_i32_0 = arith.constant 0 : i32
    %c0_i32_1 = arith.constant 0 : i32
    return %c0_i32, %c0_i32_0 : i32, i32
  }
  func.func @transform_7(%arg0: i32, %arg1: i32) -> (i32, i32) {
    %c0_i32 = arith.constant 0 : i32
    %c0_i32_0 = arith.constant 0 : i32
    %c0_i32_1 = arith.constant 0 : i32
    return %c0_i32, %c0_i32_0 : i32, i32
  }
  func.func @transform_8(%arg0: i32, %arg1: i32) -> (i32, i32) {
    %c0_i32 = arith.constant 0 : i32
    %c0_i32_0 = arith.constant 0 : i32
    return %arg1, %c0_i32 : i32, i32
  }
}

</mosaic_0001>

<llo_original>
// kernel: gnn_forward.1
$region0: #{gnn_forward.1}
  #allocation0 [shape = 'u32[]', space=smem, size = 0x4, offset = 0x4, fixed_abs, tag = 'smem constant byte address 0x4 - core index']
  #allocation1 [shape = 'u32[72,128]{1,0:T(1,128)}', space=vmem, size = 0x9000, scoped, tag = 'internal scratch']
  #allocation2 [shape = 'bf16[32,128]{1,0:T(8,128)(2,1)}', space=vmem, size = 0x2000, scoped, tag = 'scratch operand']
  #allocation3 [shape = 'bf16[32,128]{1,0:T(8,128)(2,1)}', space=vmem, size = 0x2000, scoped, tag = 'scratch operand']
  %s0 = inlined_call_operand.vmem [shape: bf16[32,32], index: 0, kind: input, shape index: {}]
  %s1 = inlined_call_operand.vmem [shape: bf16[32,128], index: 1, kind: input, shape index: {}]
  %s2 = inlined_call_operand.vmem [shape: bf16[128,128], index: 2, kind: input, shape index: {}]
  %s3 = inlined_call_operand.vmem [shape: bf16[128,128], index: 3, kind: input, shape index: {}]
  %s4 = inlined_call_operand.vmem [shape: bf16[128,128], index: 4, kind: input, shape index: {}]
  %s5 = inlined_call_operand.vmem [shape: f32[1,128], index: 5, kind: input, shape index: {}]
  %s6 = inlined_call_operand.vmem [shape: f32[1,128], index: 6, kind: input, shape index: {}]
  %s7 = inlined_call_operand.vmem [shape: f32[1,128], index: 7, kind: input, shape index: {}]
  %s8 = inlined_call_operand.vmem [shape: f32[32,128], index: 8, kind: output, shape index: {}]
  %s9 = sld [smem:[#allocation0]]
  $region77: #{gnn_forward.1} parent=0
    _
  %s11 = ssub.s32 1, %s9
  %s12 = scalar_select 0, %s11, %s9
  loop: start=0, step=1, limit=8
  $region2: #{gnn_forward.1} parent=0 // loop_pre_header
    _
  $region3: #{gnn_forward.1} parent=0 // loop_header
    %s14 = sphi 0, %s18
    %p15 = scmp.ge.s32.totalorder %s14, 8
    %s21 = sphi 0, %s33
    %s22 = sphi 0, %s29
    %s23 = sphi 0, %s21
    %s24 = sphi 0, %s22
    %s25 = sphi 0, %s23
    %s26 = sphi 0, %s24
    %s36 = sphi 0, %s38
    %s39 = sphi 0, %s36
    %s40 = sphi 0, %s39
    %s56 = sphi 0, %s40
    %s60 = sphi 0, %s60
    %s62 = sphi 0, %s60
    %s63 = sphi 0, %s62
    %s77 = sphi 0, %s63
    %s81 = sphi 0, %s81
    %s83 = sphi 0, %s81
    %s84 = sphi 0, %s83
    %s98 = sphi 0, %s84
    %s102 = sphi 0, %s102
    %s104 = sphi 0, %s102
    %s105 = sphi 0, %s104
    %s119 = sphi 0, %s105
    %s123 = sphi 0, %s123
    %s125 = sphi 0, %s123
    %s126 = sphi 0, %s125
    %s140 = sphi 0, %s126
    %s144 = sphi 0, %s144
    %s146 = sphi 0, %s144
    %s147 = sphi 0, %s146
    %s161 = sphi 0, %s147
    %s165 = sphi 0, %s165
    %s167 = sphi 0, %s165
    %s168 = sphi 0, %s167
    %s182 = sphi 0, %s168
    %s186 = sphi 0, %s186
    %s188 = sphi 0, %s186
    %s189 = sphi 0, %s188
    %s203 = sphi 0, %s189
    %s209 = sphi 0, %s211
    %s212 = sphi 0, %s209
    %s213 = sphi 0, %s212
    %s229 = sphi 0, %s213
  $region4: #{gnn_forward.1} parent=0 // loop_header_branch
    %17 = sbr.rel (%p15) target = $region8
  $region5: #{gnn_forward.1} parent=0 // loop_body
    %s19 = ssub.s32 %s14, 1
    %s20 = ssub.s32 %s14, 2
    %s27 = sadd.s32 1, %s22
    %p28 = scmp.ge.s32.totalorder %s27, 2
    %s29 = scalar_select %p28, 0, %s27
    %s30 = sadd.s32 1, %s21
    %s31 = scalar_select %p28, %s30, %s21
    %p32 = scmp.ge.s32.totalorder %s31, 3
    %s33 = scalar_select %p32, 0, %s31
    %s34 = ssub.s32 %s22, %s29
    %p35 = scmp.eq.s32.totalorder %s34, 0
    %s37 = sadd.s32 %s36, 1
    %s38 = scalar_select %p35, %s36, %s37
    %p41 = pneg %p35
    %p42 = scmp.eq.s32.totalorder %s14, 5
    %p43 = por %p41, %p42
    %p44 = scmp.ne.s32.totalorder %s36, %s39
    %p45 = scmp.eq.s32.totalorder %s14, 0
    %p46 = por %p44, %p45
    %p47 = scmp.ne.s32.totalorder %s36, %s39
    %p48 = scmp.eq.s32.totalorder %s19, 5
    %p49 = por %p47, %p48
    %p50 = scmp.ne.s32.totalorder %s39, %s40
    %p51 = scmp.eq.s32.totalorder %s19, 0
    %p52 = por %p50, %p51
    %p53 = scmp.ne.s32.totalorder %s39, %s40
    %p54 = scmp.eq.s32.totalorder %s20, 5
    %p55 = por %p53, %p54
    %p57 = scmp.ne.s32.totalorder %s40, %s56
    %p58 = scmp.eq.s32.totalorder %s20, 0
    %p59 = por %p57, %p58
    %s61 = sadd.s32 %s60, 1
    %p64 = scmp.eq.s32.totalorder %s14, 5
    %p65 = scmp.ne.s32.totalorder %s60, %s62
    %p66 = scmp.eq.s32.totalorder %s14, 0
    %p67 = por %p65, %p66
    %p68 = scmp.ne.s32.totalorder %s60, %s62
    %p69 = scmp.eq.s32.totalorder %s19, 5
    %p70 = por %p68, %p69
    %p71 = scmp.ne.s32.totalorder %s62, %s63
    %p72 = scmp.eq.s32.totalorder %s19, 0
    %p73 = por %p71, %p72
    %p74 = scmp.ne.s32.totalorder %s62, %s63
    %p75 = scmp.eq.s32.totalorder %s20, 5
    %p76 = por %p74, %p75
    %p78 = scmp.ne.s32.totalorder %s63, %s77
    %p79 = scmp.eq.s32.totalorder %s20, 0
    %p80 = por %p78, %p79
    %s82 = sadd.s32 %s81, 1
    %p85 = scmp.eq.s32.totalorder %s14, 5
    %p86 = scmp.ne.s32.totalorder %s81, %s83
    %p87 = scmp.eq.s32.totalorder %s14, 0
    %p88 = por %p86, %p87
    %p89 = scmp.ne.s32.totalorder %s81, %s83
    %p90 = scmp.eq.s32.totalorder %s19, 5
    %p91 = por %p89, %p90
    %p92 = scmp.ne.s32.totalorder %s83, %s84
    %p93 = scmp.eq.s32.totalorder %s19, 0
    %p94 = por %p92, %p93
    %p95 = scmp.ne.s32.totalorder %s83, %s84
    %p96 = scmp.eq.s32.totalorder %s20, 5
    %p97 = por %p95, %p96
    %p99 = scmp.ne.s32.totalorder %s84, %s98
    %p100 = scmp.eq.s32.totalorder %s20, 0
    %p101 = por %p99, %p100
    %s103 = sadd.s32 %s102, 1
    %p106 = scmp.eq.s32.totalorder %s14, 5
    %p107 = scmp.ne.s32.totalorder %s102, %s104
    %p108 = scmp.eq.s32.totalorder %s14, 0
    %p109 = por %p107, %p108
    %p110 = scmp.ne.s32.totalorder %s102, %s104
    %p111 = scmp.eq.s32.totalorder %s19, 5
    %p112 = por %p110, %p111
    %p113 = scmp.ne.s32.totalorder %s104, %s105
    %p114 = scmp.eq.s32.totalorder %s19, 0
    %p115 = por %p113, %p114
    %p116 = scmp.ne.s32.totalorder %s104, %s105
    %p117 = scmp.eq.s32.totalorder %s20, 5
    %p118 = por %p116, %p117
    %p120 = scmp.ne.s32.totalorder %s105, %s119
    %p121 = scmp.eq.s32.totalorder %s20, 0
    %p122 = por %p120, %p121
    %s124 = sadd.s32 %s123, 1
    %p127 = scmp.eq.s32.totalorder %s14, 5
    %p128 = scmp.ne.s32.totalorder %s123, %s125
    %p129 = scmp.eq.s32.totalorder %s14, 0
    %p130 = por %p128, %p129
    %p131 = scmp.ne.s32.totalorder %s123, %s125
    %p132 = scmp.eq.s32.totalorder %s19, 5
    %p133 = por %p131, %p132
    %p134 = scmp.ne.s32.totalorder %s125, %s126
    %p135 = scmp.eq.s32.totalorder %s19, 0
    %p136 = por %p134, %p135
    %p137 = scmp.ne.s32.totalorder %s125, %s126
    %p138 = scmp.eq.s32.totalorder %s20, 5
    %p139 = por %p137, %p138
    %p141 = scmp.ne.s32.totalorder %s126, %s140
    %p142 = scmp.eq.s32.totalorder %s20, 0
    %p143 = por %p141, %p142
    %s145 = sadd.s32 %s144, 1
    %p148 = scmp.eq.s32.totalorder %s14, 5
    %p149 = scmp.ne.s32.totalorder %s144, %s146
    %p150 = scmp.eq.s32.totalorder %s14, 0
    %p151 = por %p149, %p150
    %p152 = scmp.ne.s32.totalorder %s144, %s146
    %p153 = scmp.eq.s32.totalorder %s19, 5
    %p154 = por %p152, %p153
    %p155 = scmp.ne.s32.totalorder %s146, %s147
    %p156 = scmp.eq.s32.totalorder %s19, 0
    %p157 = por %p155, %p156
    %p158 = scmp.ne.s32.totalorder %s146, %s147
    %p159 = scmp.eq.s32.totalorder %s20, 5
    %p160 = por %p158, %p159
    %p162 = scmp.ne.s32.totalorder %s147, %s161
    %p163 = scmp.eq.s32.totalorder %s20, 0
    %p164 = por %p162, %p163
    %s166 = sadd.s32 %s165, 1
    %p169 = scmp.eq.s32.totalorder %s14, 5
    %p170 = scmp.ne.s32.totalorder %s165, %s167
    %p171 = scmp.eq.s32.totalorder %s14, 0
    %p172 = por %p170, %p171
    %p173 = scmp.ne.s32.totalorder %s165, %s167
    %p174 = scmp.eq.s32.totalorder %s19, 5
    %p175 = por %p173, %p174
    %p176 = scmp.ne.s32.totalorder %s167, %s168
    %p177 = scmp.eq.s32.totalorder %s19, 0
    %p178 = por %p176, %p177
    %p179 = scmp.ne.s32.totalorder %s167, %s168
    %p180 = scmp.eq.s32.totalorder %s20, 5
    %p181 = por %p179, %p180
    %p183 = scmp.ne.s32.totalorder %s168, %s182
    %p184 = scmp.eq.s32.totalorder %s20, 0
    %p185 = por %p183, %p184
    %s187 = sadd.s32 %s186, 1
    %p190 = scmp.eq.s32.totalorder %s14, 5
    %p191 = scmp.ne.s32.totalorder %s186, %s188
    %p192 = scmp.eq.s32.totalorder %s14, 0
    %p193 = por %p191, %p192
    %p194 = scmp.ne.s32.totalorder %s186, %s188
    %p195 = scmp.eq.s32.totalorder %s19, 5
    %p196 = por %p194, %p195
    %p197 = scmp.ne.s32.totalorder %s188, %s189
    %p198 = scmp.eq.s32.totalorder %s19, 0
    %p199 = por %p197, %p198
    %p200 = scmp.ne.s32.totalorder %s188, %s189
    %p201 = scmp.eq.s32.totalorder %s20, 5
    %p202 = por %p200, %p201
    %p204 = scmp.ne.s32.totalorder %s189, %s203
    %p205 = scmp.eq.s32.totalorder %s20, 0
    %p206 = por %p204, %p205
    %s207 = ssub.s32 %s22, %s29
    %p208 = scmp.eq.s32.totalorder %s207, 0
    %s210 = sadd.s32 %s209, 1
    %s211 = scalar_select %p208, %s209, %s210
    %p214 = pneg %p208
    %p215 = scmp.eq.s32.totalorder %s14, 5
    %p216 = por %p214, %p215
    %p217 = scmp.ne.s32.totalorder %s209, %s212
    %p218 = scmp.eq.s32.totalorder %s14, 0
    %p219 = por %p217, %p218
    %p220 = scmp.ne.s32.totalorder %s209, %s212
    %p221 = scmp.eq.s32.totalorder %s19, 5
    %p222 = por %p220, %p221
    %p223 = scmp.ne.s32.totalorder %s212, %s213
    %p224 = scmp.eq.s32.totalorder %s19, 0
    %p225 = por %p223, %p224
    %p226 = scmp.ne.s32.totalorder %s212, %s213
    %p227 = scmp.eq.s32.totalorder %s20, 5
    %p228 = por %p226, %p227
    %p230 = scmp.ne.s32.totalorder %s213, %s229
    %p231 = scmp.eq.s32.totalorder %s20, 0
    %p232 = por %p230, %p231
    %p233 = scmp.le.s32.totalorder 1, %s14
    %p234 = scmp.lt.s32.totalorder %s14, 7
    %p235 = pnand %p233, %p234
    %p236 = pneg %p235
    // Predicated region
    $region9: #{gnn_forward.1} parent=5 // pred_check
      _
    $region10: #{gnn_forward.1} parent=5 // pred_check_branch
      %238 = sbr.rel (%p235) target = $region12
    $region11: #{gnn_forward.1} parent=5 // pred_region
      %s239 = ssub.s32 %s14, 1
      // Predicated region
      $region13: #{gnn_forward.1} parent=11 // pred_check
        %p240 = pneg %p73
      $region14: #{gnn_forward.1} parent=11 // pred_check_branch
        %242 = sbr.rel (%p240) target = $region16
      $region15: #{gnn_forward.1} parent=11 // pred_region
        _
      $region16: #{gnn_forward.1} parent=11 // pred_fallthru
        _
      // Predicated region
      $region17: #{gnn_forward.1} parent=11 // pred_check
        %p243 = pneg %p94
      $region18: #{gnn_forward.1} parent=11 // pred_check_branch
        %245 = sbr.rel (%p243) target = $region20
      $region19: #{gnn_forward.1} parent=11 // pred_region
        _
      $region20: #{gnn_forward.1} parent=11 // pred_fallthru
        _
      // Predicated region
      $region21: #{gnn_forward.1} parent=11 // pred_check
        %p246 = pneg %p115
      $region22: #{gnn_forward.1} parent=11 // pred_check_branch
        %248 = sbr.rel (%p246) target = $region24
      $region23: #{gnn_forward.1} parent=11 // pred_region
        _
      $region24: #{gnn_forward.1} parent=11 // pred_fallthru
        _
      // Predicated region
      $region25: #{gnn_forward.1} parent=11 // pred_check
        %p249 = pneg %p136
      $region26: #{gnn_forward.1} parent=11 // pred_check_branch
        %251 = sbr.rel (%p249) target = $region28
      $region27: #{gnn_forward.1} parent=11 // pred_region
        _
      $region28: #{gnn_forward.1} parent=11 // pred_fallthru
        _
      // Predicated region
      $region29: #{gnn_forward.1} parent=11 // pred_check
        %p252 = pneg %p157
      $region30: #{gnn_forward.1} parent=11 // pred_check_branch
        %254 = sbr.rel (%p252) target = $region32
      $region31: #{gnn_forward.1} parent=11 // pred_region
        _
      $region32: #{gnn_forward.1} parent=11 // pred_fallthru
        _
      // Predicated region
      $region33: #{gnn_forward.1} parent=11 // pred_check
        %p255 = pneg %p178
      $region34: #{gnn_forward.1} parent=11 // pred_check_branch
        %257 = sbr.rel (%p255) target = $region36
      $region35: #{gnn_forward.1} parent=11 // pred_region
        _
      $region36: #{gnn_forward.1} parent=11 // pred_fallthru
        _
      // Predicated region
      $region37: #{gnn_forward.1} parent=11 // pred_check
        %p258 = pneg %p199
      $region38: #{gnn_forward.1} parent=11 // pred_check_branch
        %260 = sbr.rel (%p258) target = $region40
      $region39: #{gnn_forward.1} parent=11 // pred_region
        _
      $region40: #{gnn_forward.1} parent=11 // pred_fallthru
        _
    $region12: #{gnn_forward.1} parent=5 // pred_fallthru
      _
    %p261 = scmp.lt.s32.totalorder %s14, 6
    // Predicated region
    $region41: #{gnn_forward.1} parent=5 // pred_check
      %p262 = pneg %p261
    $region42: #{gnn_forward.1} parent=5 // pred_check_branch
      %264 = sbr.rel (%p262) target = $region44
    $region43: #{gnn_forward.1} parent=5 // pred_region
      // Predicated region
      $region45: #{gnn_forward.1} parent=43 // pred_check
        %p265 = pneg %p46
      $region46: #{gnn_forward.1} parent=43 // pred_check_branch
        %267 = sbr.rel (%p265) target = $region48
      $region47: #{gnn_forward.1} parent=43 // pred_region
        %s268 = smul.u32 2, %s22
        %p269 = scmp.lt.s32.totalorder %s268, 3
        %s270 = scalar_select %p269, %s268, 3
        %s271 = smul.addr %s270, 4
        %s272 = scalar_lea.vmem %s0, %s271
        %s273 = smul.u32 2, %s22
      $region48: #{gnn_forward.1} parent=43 // pred_fallthru
        _
    $region44: #{gnn_forward.1} parent=5 // pred_fallthru
      _
    %p274 = scmp.le.s32.totalorder 1, %s14
    %p275 = scmp.lt.s32.totalorder %s14, 7
    %p276 = pnand %p274, %p275
    %p277 = pneg %p276
    // Predicated region
    $region49: #{gnn_forward.1} parent=5 // pred_check
      _
    $region50: #{gnn_forward.1} parent=5 // pred_check_branch
      %279 = sbr.rel (%p276) target = $region52
    $region51: #{gnn_forward.1} parent=5 // pred_region
      %s280 = ssub.s32 %s14, 1
      %s281 = smul.u32 2, %s24
      %p282 = scmp.lt.s32.totalorder %s281, 3
      %s283 = scalar_select %p282, %s281, 3
      %s284 = smul.addr %s283, 4
      %s285 = scalar_lea.vmem %s0, %s284
      %p286 = pneg %p52
      %p287 = pneg %p49
      %p288 = pneg %p73
      %p289 = pneg %p70
      %p290 = pneg %p94
      %p291 = pneg %p91
      %p292 = pneg %p115
      %p293 = pneg %p112
      %p294 = pneg %p136
      %p295 = pneg %p133
      %p296 = pneg %p157
      %p297 = pneg %p154
      %p298 = pneg %p178
      %p299 = pneg %p175
      %p300 = pneg %p199
      %p301 = pneg %p196
      %p302 = pneg %p225
      %p303 = pneg %p222
      %s304 = smul.u32 2, %s24
      %p305 = scmp.lt.s32.totalorder %s304, 3
      %s306 = scalar_select %p305, %s304, 3
      %s307 = smul.addr %s306, 8
      %s308 = scalar_lea.vmem %s8, %s307
      %s309 = smul.u32 2, %s24
      %p310 = scmp.lt.s32.totalorder %s309, 3
      %s311 = scalar_select %p310, %s309, 3
      %s312 = smul.addr %s311, 4
      %s313 = scalar_lea.vmem %s0, %s312
      %s314 = smul.u32 2, %s24
      %s315 = smul.u32 2, %s24
      %p316 = scmp.lt.s32.totalorder %s315, 3
      %s317 = scalar_select %p316, %s315, 3
      %s318 = smul.addr %s317, 8
      %s319 = scalar_lea.vmem %s8, %s318
      %s320 = smul.u32 2, %s24
      %s322 = smul.u32 %s24, 16
      %v323 = vld [vmem:[%s313] sm:$0xf]
      %v324 = vld [vmem:[%s313 + $0x4] sm:$0xf]
      %p325 = scmp.eq.s32.totalorder %s23, 0
      // Predicated region
      $region53: #{gnn_forward.1} parent=51 // pred_check
        %p326 = pneg %p325
      $region54: #{gnn_forward.1} parent=51 // pred_check_branch
        %328 = sbr.rel (%p326) target = $region56
      $region55: #{gnn_forward.1} parent=51 // pred_region
        %v329 = vld [vmem:[%s1] sm:$0xf]
        %v330 = vld [vmem:[%s1 + $0x4] sm:$0xf]
        %v331 = vld [vmem:[%s1 + $0x8] sm:$0xf]
        %v332 = vld [vmem:[%s1 + $0xc] sm:$0xf]
        %v333 = vld [vmem:[%s2] sm:$0xf]
        %v334 = vld [vmem:[%s2 + $0x4] sm:$0xf]
        %v335 = vld [vmem:[%s2 + $0x8] sm:$0xf]
        %v336 = vld [vmem:[%s2 + $0xc] sm:$0xf]
        %v337 = vld [vmem:[%s2 + $0x10] sm:$0xf]
        %v338 = vld [vmem:[%s2 + $0x14] sm:$0xf]
        %v339 = vld [vmem:[%s2 + $0x18] sm:$0xf]
        %v340 = vld [vmem:[%s2 + $0x1c] sm:$0xf]
        %v341 = vld [vmem:[%s2 + $0x20] sm:$0xf]
        %v342 = vld [vmem:[%s2 + $0x24] sm:$0xf]
        %v343 = vld [vmem:[%s2 + $0x28] sm:$0xf]
        %v344 = vld [vmem:[%s2 + $0x2c] sm:$0xf]
        %v345 = vld [vmem:[%s2 + $0x30] sm:$0xf]
        %v346 = vld [vmem:[%s2 + $0x34] sm:$0xf]
        %v347 = vld [vmem:[%s2 + $0x38] sm:$0xf]
        %v348 = vld [vmem:[%s2 + $0x3c] sm:$0xf]
        %v349 = vld [vmem:[%s5] sm:$0x1]
        %v352 = vunpack.c.l.b16 %v323
        %v353 = vunpack.c.l.b16 %v324
        %v354 = vpack.c.b16 %v353, %v352
        %v359 = vunpack.c.l.b16 %v329
        %v360 = vunpack.c.l.b16 %v330
        %v361 = vunpack.c.l.b16 %v331
        %v362 = vunpack.c.l.b16 %v332
        %v363 = vpack.c.b16 %v360, %v359
        %v364 = vpack.c.b16 %v362, %v361
        %vm367 = vcmask 261120
        %v369 = vsel %vm367, %v354, 0
        %371 = vmatpush.bf16.msra.mxu0 0
        %372 = vmatpush.bf16.msra.mxu0 0
        %373 = vmatpush.bf16.msra.mxu0 0
        %374 = vmatpush.bf16.msra.mxu0 0
        %375 = vmatpush.bf16.msra.mxu0 0
        %376 = vmatpush.bf16.msra.mxu0 0
        %377 = vmatpush.bf16.msra.mxu0 %v364
        %378 = vmatpush.bf16.msra.mxu0 %v363
        %379 = vmatmul.bf16.gmra.mxu0 %v369
        %v380 = vpop.f32.mrf.mxu0
        %v381 = vadd.f32 0.0, %v380
        %v382 = vpop.f32.mrf.mxu0
        %v383 = vadd.f32 0.0, %v382
        %384 = vdwg.mxu0
        %v385 = vpack.c.bf16 %v383, %v381
        %v387 = vperm.slane %v349, 0
        %v405 = vunpack.c.l.b16 %v333
        %v406 = vunpack.c.l.b16 %v334
        %v407 = vunpack.c.l.b16 %v335
        %v408 = vunpack.c.l.b16 %v336
        %v409 = vunpack.c.l.b16 %v337
        %v410 = vunpack.c.l.b16 %v338
        %v411 = vunpack.c.l.b16 %v339
        %v412 = vunpack.c.l.b16 %v340
        %v413 = vunpack.c.l.b16 %v341
        %v414 = vunpack.c.l.b16 %v342
        %v415 = vunpack.c.l.b16 %v343
        %v416 = vunpack.c.l.b16 %v344
        %v417 = vunpack.c.l.b16 %v345
        %v418 = vunpack.c.l.b16 %v346
        %v419 = vunpack.c.l.b16 %v347
        %v420 = vunpack.c.l.b16 %v348
        %v421 = vpack.c.b16 %v406, %v405
        %v422 = vpack.c.b16 %v408, %v407
        %v423 = vpack.c.b16 %v410, %v409
        %v424 = vpack.c.b16 %v412, %v411
        %v425 = vpack.c.b16 %v414, %v413
        %v426 = vpack.c.b16 %v416, %v415
        %v427 = vpack.c.b16 %v418, %v417
        %v428 = vpack.c.b16 %v420, %v419
        %437 = vmatpush.bf16.msra.mxu0 %v428
        %438 = vmatpush.bf16.msra.mxu0 %v427
        %439 = vmatpush.bf16.msra.mxu0 %v426
        %440 = vmatpush.bf16.msra.mxu0 %v425
        %441 = vmatpush.bf16.msra.mxu0 %v424
        %442 = vmatpush.bf16.msra.mxu0 %v423
        %443 = vmatpush.bf16.msra.mxu0 %v422
        %444 = vmatpush.bf16.msra.mxu0 %v421
        %445 = vmatmul.bf16.gmra.mxu0 %v385
        %v446 = vpop.f32.mrf.mxu0
        %v447 = vadd.f32 %v387, %v446
        %v448 = vpop.f32.mrf.mxu0
        %v449 = vadd.f32 %v387, %v448
        %450 = vdwg.mxu0
        %v451 = vmax.f32 %v447, 0.0
        %v452 = vmax.f32 %v449, 0.0
        %v453 = vpack.c.bf16 %v451, %v451
        %v454 = vpack.c.bf16 %v452, %v452
        %s455 = sshra.s32 %s322, 3
        %s456 = sand.u32 %s322, 7
        %s457 = smul.addr %s455, 4
        %s458 = scalar_lea.vmem [#allocation2], %s457
        %459 = vst [vmem:[%s458] sm:$0xf] %v453
        %460 = vst [vmem:[%s458 + $0x4] sm:$0xf] %v454
      $region56: #{gnn_forward.1} parent=51 // pred_fallthru
        _
      %p461 = scmp.eq.s32.totalorder %s23, 1
      // Predicated region
      $region57: #{gnn_forward.1} parent=51 // pred_check
        %p462 = pneg %p461
      $region58: #{gnn_forward.1} parent=51 // pred_check_branch
        %464 = sbr.rel (%p462) target = $region60
      $region59: #{gnn_forward.1} parent=51 // pred_region
        %v465 = vld [vmem:[#allocation2] sm:$0xf]
        %v466 = vld [vmem:[#allocation2 + $0x4] sm:$0xf]
        %v467 = vld [vmem:[#allocation2 + $0x8] sm:$0xf]
        %v468 = vld [vmem:[#allocation2 + $0xc] sm:$0xf]
        %v469 = vld [vmem:[%s3] sm:$0xf]
        %v470 = vld [vmem:[%s3 + $0x4] sm:$0xf]
        %v471 = vld [vmem:[%s3 + $0x8] sm:$0xf]
        %v472 = vld [vmem:[%s3 + $0xc] sm:$0xf]
        %v473 = vld [vmem:[%s3 + $0x10] sm:$0xf]
        %v474 = vld [vmem:[%s3 + $0x14] sm:$0xf]
        %v475 = vld [vmem:[%s3 + $0x18] sm:$0xf]
        %v476 = vld [vmem:[%s3 + $0x1c] sm:$0xf]
        %v477 = vld [vmem:[%s3 + $0x20] sm:$0xf]
        %v478 = vld [vmem:[%s3 + $0x24] sm:$0xf]
        %v479 = vld [vmem:[%s3 + $0x28] sm:$0xf]
        %v480 = vld [vmem:[%s3 + $0x2c] sm:$0xf]
        %v481 = vld [vmem:[%s3 + $0x30] sm:$0xf]
        %v482 = vld [vmem:[%s3 + $0x34] sm:$0xf]
        %v483 = vld [vmem:[%s3 + $0x38] sm:$0xf]
        %v484 = vld [vmem:[%s3 + $0x3c] sm:$0xf]
        %v485 = vld [vmem:[%s6] sm:$0x1]
        %v488 = vunpack.c.l.b16 %v323
        %v489 = vunpack.c.l.b16 %v324
        %v490 = vpack.c.b16 %v489, %v488
        %v495 = vunpack.c.l.b16 %v465
        %v496 = vunpack.c.l.b16 %v466
        %v497 = vunpack.c.l.b16 %v467
        %v498 = vunpack.c.l.b16 %v468
        %v499 = vpack.c.b16 %v496, %v495
        %v500 = vpack.c.b16 %v498, %v497
        %vm503 = vcmask 261120
        %v505 = vsel %vm503, %v490, 0
        %507 = vmatpush.bf16.msra.mxu0 0
        %508 = vmatpush.bf16.msra.mxu0 0
        %509 = vmatpush.bf16.msra.mxu0 0
        %510 = vmatpush.bf16.msra.mxu0 0
        %511 = vmatpush.bf16.msra.mxu0 0
        %512 = vmatpush.bf16.msra.mxu0 0
        %513 = vmatpush.bf16.msra.mxu0 %v500
        %514 = vmatpush.bf16.msra.mxu0 %v499
        %515 = vmatmul.bf16.gmra.mxu0 %v505
        %v516 = vpop.f32.mrf.mxu0
        %v517 = vadd.f32 0.0, %v516
        %v518 = vpop.f32.mrf.mxu0
        %v519 = vadd.f32 0.0, %v518
        %520 = vdwg.mxu0
        %v521 = vpack.c.bf16 %v519, %v517
        %v523 = vperm.slane %v485, 0
        %v541 = vunpack.c.l.b16 %v469
        %v542 = vunpack.c.l.b16 %v470
        %v543 = vunpack.c.l.b16 %v471
        %v544 = vunpack.c.l.b16 %v472
        %v545 = vunpack.c.l.b16 %v473
        %v546 = vunpack.c.l.b16 %v474
        %v547 = vunpack.c.l.b16 %v475
        %v548 = vunpack.c.l.b16 %v476
        %v549 = vunpack.c.l.b16 %v477
        %v550 = vunpack.c.l.b16 %v478
        %v551 = vunpack.c.l.b16 %v479
        %v552 = vunpack.c.l.b16 %v480
        %v553 = vunpack.c.l.b16 %v481
        %v554 = vunpack.c.l.b16 %v482
        %v555 = vunpack.c.l.b16 %v483
        %v556 = vunpack.c.l.b16 %v484
        %v557 = vpack.c.b16 %v542, %v541
        %v558 = vpack.c.b16 %v544, %v543
        %v559 = vpack.c.b16 %v546, %v545
        %v560 = vpack.c.b16 %v548, %v547
        %v561 = vpack.c.b16 %v550, %v549
        %v562 = vpack.c.b16 %v552, %v551
        %v563 = vpack.c.b16 %v554, %v553
        %v564 = vpack.c.b16 %v556, %v555
        %573 = vmatpush.bf16.msra.mxu0 %v564
        %574 = vmatpush.bf16.msra.mxu0 %v563
        %575 = vmatpush.bf16.msra.mxu0 %v562
        %576 = vmatpush.bf16.msra.mxu0 %v561
        %577 = vmatpush.bf16.msra.mxu0 %v560
        %578 = vmatpush.bf16.msra.mxu0 %v559
        %579 = vmatpush.bf16.msra.mxu0 %v558
        %580 = vmatpush.bf16.msra.mxu0 %v557
        %581 = vmatmul.bf16.gmra.mxu0 %v521
        %v582 = vpop.f32.mrf.mxu0
        %v583 = vadd.f32 %v523, %v582
        %v584 = vpop.f32.mrf.mxu0
        %v585 = vadd.f32 %v523, %v584
        %586 = vdwg.mxu0
        %v587 = vmax.f32 %v583, 0.0
        %v588 = vmax.f32 %v585, 0.0
        %v589 = vpack.c.bf16 %v587, %v587
        %v590 = vpack.c.bf16 %v588, %v588
        %s591 = sshra.s32 %s322, 3
        %s592 = sand.u32 %s322, 7
        %s593 = smul.addr %s591, 4
        %s594 = scalar_lea.vmem [#allocation3], %s593
        %595 = vst [vmem:[%s594] sm:$0xf] %v589
        %596 = vst [vmem:[%s594 + $0x4] sm:$0xf] %v590
      $region60: #{gnn_forward.1} parent=51 // pred_fallthru
        _
      %p597 = scmp.eq.s32.totalorder %s23, 2
      // Predicated region
      $region61: #{gnn_forward.1} parent=51 // pred_check
        %p598 = pneg %p597
      $region62: #{gnn_forward.1} parent=51 // pred_check_branch
        %600 = sbr.rel (%p598) target = $region64
      $region63: #{gnn_forward.1} parent=51 // pred_region
        %v601 = vld [vmem:[#allocation3] sm:$0xf]
        %v602 = vld [vmem:[#allocation3 + $0x4] sm:$0xf]
        %v603 = vld [vmem:[#allocation3 + $0x8] sm:$0xf]
        %v604 = vld [vmem:[#allocation3 + $0xc] sm:$0xf]
        %v605 = vld [vmem:[%s4] sm:$0xf]
        %v606 = vld [vmem:[%s4 + $0x4] sm:$0xf]
        %v607 = vld [vmem:[%s4 + $0x8] sm:$0xf]
        %v608 = vld [vmem:[%s4 + $0xc] sm:$0xf]
        %v609 = vld [vmem:[%s4 + $0x10] sm:$0xf]
        %v610 = vld [vmem:[%s4 + $0x14] sm:$0xf]
        %v611 = vld [vmem:[%s4 + $0x18] sm:$0xf]
        %v612 = vld [vmem:[%s4 + $0x1c] sm:$0xf]
        %v613 = vld [vmem:[%s4 + $0x20] sm:$0xf]
        %v614 = vld [vmem:[%s4 + $0x24] sm:$0xf]
        %v615 = vld [vmem:[%s4 + $0x28] sm:$0xf]
        %v616 = vld [vmem:[%s4 + $0x2c] sm:$0xf]
        %v617 = vld [vmem:[%s4 + $0x30] sm:$0xf]
        %v618 = vld [vmem:[%s4 + $0x34] sm:$0xf]
        %v619 = vld [vmem:[%s4 + $0x38] sm:$0xf]
        %v620 = vld [vmem:[%s4 + $0x3c] sm:$0xf]
        %v621 = vld [vmem:[%s7] sm:$0x1]
        %v624 = vunpack.c.l.b16 %v323
        %v625 = vunpack.c.l.b16 %v324
        %v626 = vpack.c.b16 %v625, %v624
        %v631 = vunpack.c.l.b16 %v601
        %v632 = vunpack.c.l.b16 %v602
        %v633 = vunpack.c.l.b16 %v603
        %v634 = vunpack.c.l.b16 %v604
        %v635 = vpack.c.b16 %v632, %v631
        %v636 = vpack.c.b16 %v634, %v633
        %vm639 = vcmask 261120
        %v641 = vsel %vm639, %v626, 0
        %643 = vmatpush.bf16.msra.mxu0 0
        %644 = vmatpush.bf16.msra.mxu0 0
        %645 = vmatpush.bf16.msra.mxu0 0
        %646 = vmatpush.bf16.msra.mxu0 0
        %647 = vmatpush.bf16.msra.mxu0 0
        %648 = vmatpush.bf16.msra.mxu0 0
        %649 = vmatpush.bf16.msra.mxu0 %v636
        %650 = vmatpush.bf16.msra.mxu0 %v635
        %651 = vmatmul.bf16.gmra.mxu0 %v641
        %v652 = vpop.f32.mrf.mxu0
        %v653 = vadd.f32 0.0, %v652
        %v654 = vpop.f32.mrf.mxu0
        %v655 = vadd.f32 0.0, %v654
        %656 = vdwg.mxu0
        %v657 = vpack.c.bf16 %v655, %v653
        %v659 = vperm.slane %v621, 0
        %v677 = vunpack.c.l.b16 %v605
        %v678 = vunpack.c.l.b16 %v606
        %v679 = vunpack.c.l.b16 %v607
        %v680 = vunpack.c.l.b16 %v608
        %v681 = vunpack.c.l.b16 %v609
        %v682 = vunpack.c.l.b16 %v610
        %v683 = vunpack.c.l.b16 %v611
        %v684 = vunpack.c.l.b16 %v612
        %v685 = vunpack.c.l.b16 %v613
        %v686 = vunpack.c.l.b16 %v614
        %v687 = vunpack.c.l.b16 %v615
        %v688 = vunpack.c.l.b16 %v616
        %v689 = vunpack.c.l.b16 %v617
        %v690 = vunpack.c.l.b16 %v618
        %v691 = vunpack.c.l.b16 %v619
        %v692 = vunpack.c.l.b16 %v620
        %v693 = vpack.c.b16 %v678, %v677
        %v694 = vpack.c.b16 %v680, %v679
        %v695 = vpack.c.b16 %v682, %v681
        %v696 = vpack.c.b16 %v684, %v683
        %v697 = vpack.c.b16 %v686, %v685
        %v698 = vpack.c.b16 %v688, %v687
        %v699 = vpack.c.b16 %v690, %v689
        %v700 = vpack.c.b16 %v692, %v691
        %709 = vmatpush.bf16.msra.mxu0 %v700
        %710 = vmatpush.bf16.msra.mxu0 %v699
        %711 = vmatpush.bf16.msra.mxu0 %v698
        %712 = vmatpush.bf16.msra.mxu0 %v697
        %713 = vmatpush.bf16.msra.mxu0 %v696
        %714 = vmatpush.bf16.msra.mxu0 %v695
        %715 = vmatpush.bf16.msra.mxu0 %v694
        %716 = vmatpush.bf16.msra.mxu0 %v693
        %717 = vmatmul.bf16.gmra.mxu0 %v657
        %v718 = vpop.f32.mrf.mxu0
        %v719 = vadd.f32 %v659, %v718
        %v720 = vpop.f32.mrf.mxu0
        %v721 = vadd.f32 %v659, %v720
        %722 = vdwg.mxu0
        %v723 = vlaneseq
        %v724 = vand.u32 %v723, 127
        %vm725 = vcmp.lt.s32.totalorder %v724, 4
        %v726 = vsel %vm725, %v719, -1e+30
        %v727 = vsel %vm725, %v721, -1e+30
        %728 = vmax.xlane.f32.xlu0 %v726
        %v729 = vpop.xlane.xlu0 %728
        %730 = vmax.xlane.f32.xlu0 %v727
        %v731 = vpop.xlane.xlu0 %730
        %v732 = vsub.f32 %v726, %v729
        %v733 = vsub.f32 %v727, %v731
        %v734 = vmul.f32 %v732, 1.442695
        %v735 = vpow.pop %v734
        %v736 = vmul.f32 %v733, 1.442695
        %v737 = vpow.pop %v736
        %v738 = vsel %vm725, %v735, 0.0
        %v739 = vsel %vm725, %v737, 0.0
        %740 = vadd.xlane.f32.xlu0 %v738
        %v741 = vpop.xlane.xlu0 %740
        %742 = vadd.xlane.f32.xlu0 %v739
        %v743 = vpop.xlane.xlu0 %742
        %v744 = vlog2.pop %v741
        %v745 = vmul.f32 %v744, 0.6931472
        %v746 = vlog2.pop %v743
        %v747 = vmul.f32 %v746, 0.6931472
        %v748 = vsub.f32 %v732, %v745
        %v749 = vsub.f32 %v733, %v747
        %750 = vst [vmem:[%s319] sm:$0xff] %v748
        %751 = vst [vmem:[%s319 + $0x8] sm:$0xff] %v749
      $region64: #{gnn_forward.1} parent=51 // pred_fallthru
        _
      %s752 = smul.u32 2, %s24
      %p753 = scmp.lt.s32.totalorder %s752, 3
      %s754 = scalar_select %p753, %s752, 3
      %s755 = smul.addr %s754, 8
      %s756 = scalar_lea.vmem %s8, %s755
      // Predicated region
      $region65: #{gnn_forward.1} parent=51 // pred_check
        %p757 = pneg %p222
      $region66: #{gnn_forward.1} parent=51 // pred_check_branch
        %759 = sbr.rel (%p757) target = $region68
      $region67: #{gnn_forward.1} parent=51 // pred_region
        %s760 = smul.u32 2, %s24
      $region68: #{gnn_forward.1} parent=51 // pred_fallthru
        _
    $region52: #{gnn_forward.1} parent=5 // pred_fallthru
      _
    %p761 = scmp.le.s32.totalorder 2, %s14
    // Predicated region
    $region69: #{gnn_forward.1} parent=5 // pred_check
      %p762 = pneg %p761
    $region70: #{gnn_forward.1} parent=5 // pred_check_branch
      %764 = sbr.rel (%p762) target = $region72
    $region71: #{gnn_forward.1} parent=5 // pred_region
      %s765 = ssub.s32 %s14, 2
      // Predicated region
      $region73: #{gnn_forward.1} parent=71 // pred_check
        %p766 = pneg %p228
      $region74: #{gnn_forward.1} parent=71 // pred_check_branch
        %768 = sbr.rel (%p766) target = $region76
      $region75: #{gnn_forward.1} parent=71 // pred_region
        %s769 = smul.u32 2, %s26
        %p770 = scmp.lt.s32.totalorder %s769, 3
        %s771 = scalar_select %p770, %s769, 3
        %s772 = smul.addr %s771, 8
        %s773 = scalar_lea.vmem %s8, %s772
      $region76: #{gnn_forward.1} parent=71 // pred_fallthru
        _
    $region72: #{gnn_forward.1} parent=5 // pred_fallthru
      _
  $region6: #{gnn_forward.1} parent=0 // loop_footer
    %s18 = sadd.s32 1, %s14
  $region7: #{gnn_forward.1} parent=0 // loop_footer_branch
    %13 = sbr.rel target = $region3
  $region8: #{gnn_forward.1} parent=0 // loop_exit
    _

</llo_original>
